<compile_context>
chip_gen: v6e
topology: v6e:2x2x1
jax: 0.10.0
libtpu: 0.0.40
codegen_flags: <defaults>
</compile_context>

<pallas_src>
import functools
import math

import jax
import jax.numpy as jnp
import numpy as np
from jax.experimental import pallas as pl
from jax.experimental.pallas import tpu as pltpu


def _ceil_div(a, b):
    return -(-a // b)


def _round_up(a, b):
    return _ceil_div(a, b) * b


@functools.lru_cache(maxsize=None)
def _vmem_budgets():
    """Generation-aware (block budget, scoped VMEM limit) in bytes.

    v5e/v6e have 128 MiB of VMEM per TensorCore, v7x only 64 MiB, so the
    double-buffered pipeline blocks + in-kernel compute temporaries are sized
    from the attached chip instead of a fixed v6e-tuned constant.
    """
    vmem = 128 * 1024 * 1024
    try:
        cap = getattr(pltpu.get_tpu_info(), "vmem_capacity_bytes", None)
        if cap:
            vmem = int(cap)
    except Exception:
        pass
    budget = min(int(vmem * 0.35), 40 * 1024 * 1024)   # blocks + temps per grid step
    limit = min(int(vmem * 0.75), 64 * 1024 * 1024)    # scoped VMEM limit
    return budget, limit


def _col_pool_matrix(w_in, w_out):
    """(w_in, w_out) operator: column pair-sum fused with the avg divisor.

    Entry [j, k] = 1 / (2 * ccnt_k) if input column j falls in output window k,
    where ccnt_k is the count_include_pad=False column count (2, or 1 for a
    ceil_mode tail column).  The extra 1/2 cancels the 2-row sum done on the
    VPU (the odd-height tail row is pre-doubled by the kernel).  Built once on
    the host (numpy constant) so no iota/where work runs per grid step.
    """
    aw = np.zeros((w_in, w_out), np.float32)
    for k in range(w_out):
        cols = [j for j in (2 * k, 2 * k + 1) if j < w_in]
        for j in cols:
            aw[j, k] = 1.0 / (2 * len(cols))
    return jnp.asarray(aw)


def _make_kernel(level_dims, tn, packed, has_odd):
    """Fused multi-level 2x2 avg-pool on flattened (tn*H, W) slabs.

    level_dims: tuple of (h_in, w_in, h_out, w_out) per pooling level.
    packed:     sub-32-bit input dtype; each level's source slab is upcast once
                into an f32 VMEM scratch (f32 opmath, 32-bit strided accesses).
    """
    num = len(level_dims)

    def kernel(x_ref, *rest):
        aw_refs = rest[:num]
        o_refs = rest[num:2 * num]
        idx = 2 * num
        work = None
        if packed:
            work = rest[idx]
            idx += 1
        rowbuf = rest[idx] if has_odd else None

        src = x_ref
        for lvl, ((h_in, w_in, h_out, w_out), dst) in enumerate(zip(level_dims, o_refs)):
            aw = aw_refs[lvl][...]              # hoisted constant operator (VMEM read)
            n_rows = tn * h_in

            if packed:
                # One contiguous upcast per level; all row accesses below are f32.
                work[0:n_rows, 0:w_in] = src[...].astype(jnp.float32)

                def rows_at(start, size, stride=None):
                    return work[pl.ds(start, size, stride=stride), 0:w_in]
            else:
                def rows_at(start, size, stride=None):
                    return src[pl.ds(start, size, stride=stride), :]

            if h_in % 2 == 0:
                # Even height: plane boundaries never split a 2-row window, so
                # the whole slab is two strided sublane loads + one VPU add and
                # a single (rows, w_in)x(w_in, w_out) MXU matmul that also
                # applies the divisor.  The f32 temporaries this creates are
                # accounted for in the wrapper's VMEM budget.
                # TODO(synk): if a v7x bundle dump shows the vld/pack slot
                # binding, switch to one contiguous load + pltpu.roll + add.
                half = tn * h_out
                rows = rows_at(0, half, 2) + rows_at(1, half, 2)
                dst[...] = jnp.dot(rows, aw,
                                   preferred_element_type=jnp.float32).astype(dst.dtype)
            else:
                # ceil_mode odd height: 2-row windows must not cross plane
                # boundaries.  Pre-pool rows per plane into a contiguous
                # scratch (tail row doubled, cancelling the folded 1/2), then
                # run ONE level-wide matmul instead of tn tiny MXU pushes.
                h_pairs = h_in // 2

                def pool_plane(q):
                    bi = q * h_in
                    bo = q * h_out
                    if h_pairs > 0:
                        rowbuf[pl.ds(bo, h_pairs), 0:w_in] = (
                            rows_at(bi, h_pairs, 2) + rows_at(bi + 1, h_pairs, 2))
                    tail = rows_at(bi + h_in - 1, 1)
                    rowbuf[pl.ds(bo + h_pairs, 1), 0:w_in] = tail + tail

                if tn <= 16:
                    # Small plane counts: statically unrolled, static offsets.
                    for q in range(tn):
                        pool_plane(q)
                else:
                    def body(q, carry):
                        pool_plane(q)
                        return carry
                    jax.lax.fori_loop(0, tn, body, 0)

                pooled = rowbuf[0:tn * h_out, 0:w_in]
                dst[...] = jnp.dot(pooled, aw,
                                   preferred_element_type=jnp.float32).astype(dst.dtype)

            src = dst        # next level reads the just-written VMEM output block

    return kernel


def _fused_avg_pool(x_nhw, num):
    """x_nhw: (N, H, W). Returns a list of `num` pooled arrays (N, H_l, W_l)."""
    if num <= 0:
        return []
    n, h, w = x_nhw.shape
    dtype = x_nhw.dtype
    itemsize = jnp.dtype(dtype).itemsize
    packed = itemsize < 4
    sub = 8 * max(1, 4 // itemsize)      # sublane tile: 8 (f32), 16 (bf16), 32 (int8)

    # Per-level spatial dims (ceil_mode=True).
    level_dims = []
    hi, wi = h, w
    for _ in range(num):
        ho, wo = _ceil_div(hi, 2), _ceil_div(wi, 2)
        level_dims.append((hi, wi, ho, wo))
        hi, wi = ho, wo
    level_dims = tuple(level_dims)
    odd_levels = [d for d in level_dims if d[0] % 2 == 1]

    # Every 2-D block's row count (tn * height) must be a multiple of the
    # sublane tile unless the block covers the whole array.
    heights = (h,) + tuple(d[2] for d in level_dims)
    m = 1
    for hh in heights:
        need = sub // math.gcd(hh, sub)
        m = m * need // math.gcd(m, need)

    # ---- VMEM accounting per plane: pipeline blocks are double-buffered,
    #      f32 compute temporaries / scratch are counted once (review item). ---
    def _bytes(rows, cols, isz):
        return rows * _round_up(cols, 128) * isz

    pipeline_pp = _bytes(h, w, itemsize) + sum(
        _bytes(ho, wo, itemsize) for (_, _, ho, wo) in level_dims)
    temp_pp = sum(_bytes(ho, wi_, 4) + _bytes(ho, wo, 4)     # row pair-sum + f32 dot out
                  for (_, wi_, ho, wo) in level_dims)
    work_pp = _bytes(h, w, 4) if packed else 0               # f32 upcast slab
    rowbuf_pp = 0
    if odd_levels:
        rowbuf_pp = _bytes(max(d[2] for d in odd_levels),
                           max(d[1] for d in odd_levels), 4)
    per_plane = 2 * pipeline_pp + temp_pp + work_pp + rowbuf_pp

    budget, vmem_limit = _vmem_budgets()
    budget_planes = max(1, budget // per_plane)

    # ---- tn / grid selection: largest block that fits the budget, with an
    #      even step count (>=2, >=4 when blocks stay large) so the single
    #      "parallel" axis balances across v7x's two TensorCores. --------------
    if n <= m or n <= 1:
        tn = n
    else:
        cap = max(m, (min(budget_planes, n) // m) * m)
        g = max(2, _ceil_div(n, cap))
        if n >= 4 * m and (n // 4) * pipeline_pp >= (2 << 20):
            g = max(g, 4)                     # more steps to hide pipeline ramp
        if g % 2:
            g += 1                            # even step count for 2 TCs
        tn = min(cap, _round_up(_ceil_div(n, g), m))
        while tn > m and _ceil_div(n, tn) % 2 == 1:
            tn -= m                           # keep the realized step count even
    grid = (_ceil_div(n, tn),)
    # TODO(synk): a single plane pyramid larger than the VMEM budget would also
    # need in-kernel H/W tiling; not implemented.
    # TODO(synk): for W < 128 inputs the deeper levels store lane-sparse rows
    # (masked vst); packing several planes along the lane axis with a
    # block-diagonal column operator would make the HBM writeback lane-dense.

    x2 = x_nhw.reshape(n * h, w)              # free row-major metadata reshape

    aws = [_col_pool_matrix(wi_, wo) for (_, wi_, _, wo) in level_dims]

    out_shapes = [jax.ShapeDtypeStruct((n * ho, wo), dtype)
                  for (_, _, ho, wo) in level_dims]
    out_specs = [pl.BlockSpec((tn * ho, wo), lambda i: (i, 0))
                 for (_, _, ho, wo) in level_dims]
    in_specs = [pl.BlockSpec((tn * h, w), lambda i: (i, 0))]
    # Hoisted column-pool operators: constant block index -> fetched once.
    in_specs += [pl.BlockSpec(a.shape, lambda i: (0, 0)) for a in aws]

    scratch_shapes = []
    if packed:
        scratch_shapes.append(pltpu.VMEM((tn * h, w), jnp.float32))
    if odd_levels:
        rb_rows = _round_up(max(tn * d[2] for d in odd_levels), 8)
        rb_lanes = max(d[1] for d in odd_levels)
        rb_dtype = jnp.float32 if packed else dtype
        scratch_shapes.append(pltpu.VMEM((rb_rows, rb_lanes), rb_dtype))

    outs = pl.pallas_call(
        _make_kernel(level_dims, tn, packed, bool(odd_levels)),
        out_shape=out_shapes,
        grid_spec=pltpu.PrefetchScalarGridSpec(
            num_scalar_prefetch=0,
            grid=grid,
            in_specs=in_specs,
            out_specs=out_specs,
            scratch_shapes=scratch_shapes,
        ),
        compiler_params=pltpu.CompilerParams(
            dimension_semantics=("parallel",),
            vmem_limit_bytes=vmem_limit,
        ),
    )(x2, *aws)

    return [o.reshape(n, ho, wo)
            for o, (_, _, ho, wo) in zip(outs, level_dims)]


def avg_pool_module(s0, num=3):
    """Pallas equivalent of FTPVM AvgPool.forward: returns a list of `num` arrays."""
    if s0.ndim == 5:
        lead = s0.shape[:3]          # (B, T, C) – time-series path flattens (B, T)
    elif s0.ndim == 4:
        lead = s0.shape[:2]          # (B, C)
    else:
        raise ValueError("expected 4-D (B,C,H,W) or 5-D (B,T,C,H,W) input")
    x = s0.reshape((-1,) + s0.shape[-2:])
    outs = _fused_avg_pool(x, num)
    return [o.reshape(lead + o.shape[-2:]) for o in outs]


def _ref_pool_once(x):
    """Pure-jnp reference: AvgPool2d(2, 2, ceil_mode=True, count_include_pad=False)."""
    H, W = x.shape[-2:]
    Ho, Wo = -(-H // 2), -(-W // 2)
    pad = [(0, 0)] * (x.ndim - 2) + [(0, 2 * Ho - H), (0, 2 * Wo - W)]
    xp = jnp.pad(x, pad)
    s = xp.reshape(x.shape[:-2] + (Ho, 2, Wo, 2)).sum(axis=(-3, -1))
    rcnt = jnp.minimum(2 * jnp.arange(Ho) + 2, H) - 2 * jnp.arange(Ho)
    ccnt = jnp.minimum(2 * jnp.arange(Wo) + 2, W) - 2 * jnp.arange(Wo)
    cnt = (rcnt[:, None] * ccnt[None, :]).astype(x.dtype)
    return s / cnt


if __name__ == "__main__":
    def _check(x, num, atol, rtol, tag):
        outs = avg_pool_module(x, num=num)
        outs = [jax.block_until_ready(o) for o in outs]
        ref = x.astype(jnp.float32)
        for lvl, o in enumerate(outs):
            ref = _ref_pool_once(ref)
            assert o.shape == ref.shape, (tag, lvl, o.shape, ref.shape)
            assert jnp.allclose(o.astype(jnp.float32), ref, atol=atol, rtol=rtol), \
                f"mismatch: {tag} level {lvl}"

    k1, k2, k3, k4, k5 = jax.random.split(jax.random.PRNGKey(0), 5)

    # 4-D (B, C, H, W), even spatial dims -> fast path, 2-step grid.
    _check(jax.random.normal(k1, (2, 4, 16, 16), jnp.float32), 3, 1e-5, 1e-5, "4d-even")
    # 5-D (B, T, C, H, W) time-series path.
    _check(jax.random.normal(k2, (2, 3, 4, 16, 16), jnp.float32), 3, 1e-5, 1e-5, "5d-even")
    # Odd spatial dims -> ceil_mode odd-height / odd-width kernel path.
    _check(jax.random.normal(k3, (2, 3, 13, 11), jnp.float32), 3, 1e-5, 1e-5, "4d-odd")
    # Plane count not divisible by the chosen block size (partial last block).
    _check(jax.random.normal(k4, (2, 5, 16, 16), jnp.float32), 3, 1e-5, 1e-5, "partial")
    # bf16 input: pair-sum / matmul run in f32 opmath, outputs stored as bf16.
    _check(jax.random.normal(k5, (2, 4, 16, 16), jnp.float32).astype(jnp.bfloat16),
           3, 3e-2, 3e-2, "bf16")

    print("KERNEL_OK")
</pallas_src>

<mosaic_0001>
module attributes {stable_mosaic.version = 11 : i64} {
  func.func @kernel(%arg0: i32, %arg1: memref<64x16xf32, #tpu.memory_space<vmem>>, %arg2: memref<16x8xf32, #tpu.memory_space<vmem>>, %arg3: memref<8x4xf32, #tpu.memory_space<vmem>>, %arg4: memref<4x2xf32, #tpu.memory_space<vmem>>, %arg5: memref<32x8xf32, #tpu.memory_space<vmem>>, %arg6: memref<16x4xf32, #tpu.memory_space<vmem>>, %arg7: memref<8x2xf32, #tpu.memory_space<vmem>>) attributes {dimension_semantics = [#tpu.dimension_semantics<parallel>], iteration_bounds = array<i64: 2>, scalar_prefetch = 0 : i64, scratch_operands = 0 : i64, tpu.core_type = #tpu.core_type<tc>, window_params = [{transform_indices = @transform_0, window_bounds = array<i64: 64, 16>}, {pipeline_mode = #tpu.pipeline_mode<synchronous>, transform_indices = @transform_1, window_bounds = array<i64: 16, 8>}, {pipeline_mode = #tpu.pipeline_mode<synchronous>, transform_indices = @transform_2, window_bounds = array<i64: 8, 4>}, {pipeline_mode = #tpu.pipeline_mode<synchronous>, transform_indices = @transform_3, window_bounds = array<i64: 4, 2>}, {transform_indices = @transform_4, window_bounds = array<i64: 32, 8>}, {transform_indices = @transform_5, window_bounds = array<i64: 16, 4>}, {transform_indices = @transform_6, window_bounds = array<i64: 8, 2>}]} {
    %c0 = arith.constant 0 : index
    %c0_0 = arith.constant 0 : index
    %0 = vector.load %arg2[%c0, %c0_0] : memref<16x8xf32, #tpu.memory_space<vmem>>, vector<16x8xf32>
    %c0_1 = arith.constant 0 : index
    %c0_2 = arith.constant 0 : index
    %1 = tpu.strided_load %arg1[%c0_1, %c0_2] {strides = array<i32: 2, 1>} : memref<64x16xf32, #tpu.memory_space<vmem>>, vector<32x16xf32>
    %c1 = arith.constant 1 : index
    %c0_3 = arith.constant 0 : index
    %2 = tpu.strided_load %arg1[%c1, %c0_3] {strides = array<i32: 2, 1>} : memref<64x16xf32, #tpu.memory_space<vmem>>, vector<32x16xf32>
    %3 = arith.addf %1, %2 : vector<32x16xf32>
    %cst = arith.constant dense<0.000000e+00> : vector<32x8xf32>
    %4 = tpu.matmul %3, %0, %cst {dimension_numbers = #tpu.dot_dimension_numbers<[1], [0], [0], [1], [0, 0, 1, 1], [], []>} : vector<32x16xf32>, vector<16x8xf32>, vector<32x8xf32> -> vector<32x8xf32>
    %c0_4 = arith.constant 0 : index
    %c0_5 = arith.constant 0 : index
    %5 = vector.load %arg5[%c0_4, %c0_5] : memref<32x8xf32, #tpu.memory_space<vmem>>, vector<32x8xf32>
    tpu.vector_store %arg5[%c0_4, %c0_5], %4 {strides = array<i32>} : memref<32x8xf32, #tpu.memory_space<vmem>>, vector<32x8xf32>,
    %c0_6 = arith.constant 0 : index
    %c0_7 = arith.constant 0 : index
    %6 = vector.load %arg3[%c0_6, %c0_7] : memref<8x4xf32, #tpu.memory_space<vmem>>, vector<8x4xf32>
    %c0_8 = arith.constant 0 : index
    %c0_9 = arith.constant 0 : index
    %7 = tpu.strided_load %arg5[%c0_8, %c0_9] {strides = array<i32: 2, 1>} : memref<32x8xf32, #tpu.memory_space<vmem>>, vector<16x8xf32>
    %c1_10 = arith.constant 1 : index
    %c0_11 = arith.constant 0 : index
    %8 = tpu.strided_load %arg5[%c1_10, %c0_11] {strides = array<i32: 2, 1>} : memref<32x8xf32, #tpu.memory_space<vmem>>, vector<16x8xf32>
    %9 = arith.addf %7, %8 : vector<16x8xf32>
    %cst_12 = arith.constant dense<0.000000e+00> : vector<16x4xf32>
    %10 = tpu.matmul %9, %6, %cst_12 {dimension_numbers = #tpu.dot_dimension_numbers<[1], [0], [0], [1], [0, 0, 1, 1], [], []>} : vector<16x8xf32>, vector<8x4xf32>, vector<16x4xf32> -> vector<16x4xf32>
    %c0_13 = arith.constant 0 : index
    %c0_14 = arith.constant 0 : index
    %11 = vector.load %arg6[%c0_13, %c0_14] : memref<16x4xf32, #tpu.memory_space<vmem>>, vector<16x4xf32>
    tpu.vector_store %arg6[%c0_13, %c0_14], %10 {strides = array<i32>} : memref<16x4xf32, #tpu.memory_space<vmem>>, vector<16x4xf32>,
    %c0_15 = arith.constant 0 : index
    %c0_16 = arith.constant 0 : index
    %12 = vector.load %arg4[%c0_15, %c0_16] : memref<4x2xf32, #tpu.memory_space<vmem>>, vector<4x2xf32>
    %c0_17 = arith.constant 0 : index
    %c0_18 = arith.constant 0 : index
    %13 = tpu.strided_load %arg6[%c0_17, %c0_18] {strides = array<i32: 2, 1>} : memref<16x4xf32, #tpu.memory_space<vmem>>, vector<8x4xf32>
    %c1_19 = arith.constant 1 : index
    %c0_20 = arith.constant 0 : index
    %14 = tpu.strided_load %arg6[%c1_19, %c0_20] {strides = array<i32: 2, 1>} : memref<16x4xf32, #tpu.memory_space<vmem>>, vector<8x4xf32>
    %15 = arith.addf %13, %14 : vector<8x4xf32>
    %cst_21 = arith.constant dense<0.000000e+00> : vector<8x2xf32>
    %16 = tpu.matmul %15, %12, %cst_21 {dimension_numbers = #tpu.dot_dimension_numbers<[1], [0], [0], [1], [0, 0, 1, 1], [], []>} : vector<8x4xf32>, vector<4x2xf32>, vector<8x2xf32> -> vector<8x2xf32>
    %c0_22 = arith.constant 0 : index
    %c0_23 = arith.constant 0 : index
    %17 = vector.load %arg7[%c0_22, %c0_23] : memref<8x2xf32, #tpu.memory_space<vmem>>, vector<8x2xf32>
    tpu.vector_store %arg7[%c0_22, %c0_23], %16 {strides = array<i32>} : memref<8x2xf32, #tpu.memory_space<vmem>>, vector<8x2xf32>,
    return
  }
  func.func @transform_0(%arg0: i32) -> (i32, i32) {
    %c0_i32 = arith.constant 0 : i32
    %c0_i32_0 = arith.constant 0 : i32
    return %arg0, %c0_i32 : i32, i32
  }
  func.func @transform_1(%arg0: i32) -> (i32, i32) {
    %c0_i32 = arith.constant 0 : i32
    %c0_i32_0 = arith.constant 0 : i32
    %c0_i32_1 = arith.constant 0 : i32
    return %c0_i32, %c0_i32_0 : i32, i32
  }
  func.func @transform_2(%arg0: i32) -> (i32, i32) {
    %c0_i32 = arith.constant 0 : i32
    %c0_i32_0 = arith.constant 0 : i32
    %c0_i32_1 = arith.constant 0 : i32
    return %c0_i32, %c0_i32_0 : i32, i32
  }
  func.func @transform_3(%arg0: i32) -> (i32, i32) {
    %c0_i32 = arith.constant 0 : i32
    %c0_i32_0 = arith.constant 0 : i32
    %c0_i32_1 = arith.constant 0 : i32
    return %c0_i32, %c0_i32_0 : i32, i32
  }
  func.func @transform_4(%arg0: i32) -> (i32, i32) {
    %c0_i32 = arith.constant 0 : i32
    %c0_i32_0 = arith.constant 0 : i32
    return %arg0, %c0_i32 : i32, i32
  }
  func.func @transform_5(%arg0: i32) -> (i32, i32) {
    %c0_i32 = arith.constant 0 : i32
    %c0_i32_0 = arith.constant 0 : i32
    return %arg0, %c0_i32 : i32, i32
  }
  func.func @transform_6(%arg0: i32) -> (i32, i32) {
    %c0_i32 = arith.constant 0 : i32
    %c0_i32_0 = arith.constant 0 : i32
    return %arg0, %c0_i32 : i32, i32
  }
}

</mosaic_0001>

<llo_original>
// kernel: tpu_custom_call.1
$region0: #{tpu_custom_call.1}
  #allocation0 [shape = 'u32[]', space=smem, size = 0x4, offset = 0x4, fixed_abs, tag = 'smem constant byte address 0x4 - core index']
  #allocation1 [shape = 'u32[144,128]{1,0:T(1,128)}', space=vmem, size = 0x12000, scoped, tag = 'internal scratch']
  %s0 = inlined_call_operand.vmem [shape: f32[128,16], index: 0, kind: input, shape index: {}]
  %s1 = inlined_call_operand.vmem [shape: f32[16,8], index: 1, kind: input, shape index: {}]
  %s2 = inlined_call_operand.vmem [shape: f32[8,4], index: 2, kind: input, shape index: {}]
  %s3 = inlined_call_operand.vmem [shape: f32[4,2], index: 3, kind: input, shape index: {}]
  %s4 = inlined_call_operand.vmem [shape: f32[64,8], index: 4, kind: output, shape index: {0}]
  %s5 = inlined_call_operand.vmem [shape: f32[32,4], index: 5, kind: output, shape index: {1}]
  %s6 = inlined_call_operand.vmem [shape: f32[16,2], index: 6, kind: output, shape index: {2}]
  %7 = xla_tuple %s4, %s5, %s6
  %s8 = sld [smem:[#allocation0]]
  $region65: #{tpu_custom_call.1} parent=0
    _
  %s10 = ssub.s32 1, %s8
  %s11 = scalar_select 0, %s10, %s8
  loop: start=0, step=1, limit=4
  $region2: #{tpu_custom_call.1} parent=0 // loop_pre_header
    _
  $region3: #{tpu_custom_call.1} parent=0 // loop_header
    %s13 = sphi 0, %s17
    %p14 = scmp.ge.s32.totalorder %s13, 4
    %s23 = sphi 0, %s25
    %s26 = sphi 0, %s23
    %s27 = sphi 0, %s26
    %s43 = sphi 0, %s27
    %s47 = sphi 0, %s47
    %s49 = sphi 0, %s47
    %s50 = sphi 0, %s49
    %s64 = sphi 0, %s50
    %s68 = sphi 0, %s68
    %s70 = sphi 0, %s68
    %s71 = sphi 0, %s70
    %s85 = sphi 0, %s71
    %s89 = sphi 0, %s89
    %s91 = sphi 0, %s89
    %s92 = sphi 0, %s91
    %s106 = sphi 0, %s92
    %s112 = sphi 0, %s114
    %s115 = sphi 0, %s112
    %s116 = sphi 0, %s115
    %s132 = sphi 0, %s116
    %s138 = sphi 0, %s140
    %s141 = sphi 0, %s138
    %s142 = sphi 0, %s141
    %s158 = sphi 0, %s142
    %s164 = sphi 0, %s166
    %s167 = sphi 0, %s164
    %s168 = sphi 0, %s167
    %s184 = sphi 0, %s168
  $region4: #{tpu_custom_call.1} parent=0 // loop_header_branch
    %16 = sbr.rel (%p14) target = $region8
  $region5: #{tpu_custom_call.1} parent=0 // loop_body
    %s18 = ssub.s32 %s13, 1
    %s19 = ssub.s32 %s13, 2
    %s20 = sadd.s32 %s13, 1
    %s21 = ssub.s32 %s13, %s20
    %p22 = scmp.eq.s32.totalorder %s21, 0
    %s24 = sadd.s32 %s23, 1
    %s25 = scalar_select %p22, %s23, %s24
    %p28 = pneg %p22
    %p29 = scmp.eq.s32.totalorder %s13, 1
    %p30 = por %p28, %p29
    %p31 = scmp.ne.s32.totalorder %s23, %s26
    %p32 = scmp.eq.s32.totalorder %s13, 0
    %p33 = por %p31, %p32
    %p34 = scmp.ne.s32.totalorder %s23, %s26
    %p35 = scmp.eq.s32.totalorder %s18, 1
    %p36 = por %p34, %p35
    %p37 = scmp.ne.s32.totalorder %s26, %s27
    %p38 = scmp.eq.s32.totalorder %s18, 0
    %p39 = por %p37, %p38
    %p40 = scmp.ne.s32.totalorder %s26, %s27
    %p41 = scmp.eq.s32.totalorder %s19, 1
    %p42 = por %p40, %p41
    %p44 = scmp.ne.s32.totalorder %s27, %s43
    %p45 = scmp.eq.s32.totalorder %s19, 0
    %p46 = por %p44, %p45
    %s48 = sadd.s32 %s47, 1
    %p51 = scmp.eq.s32.totalorder %s13, 1
    %p52 = scmp.ne.s32.totalorder %s47, %s49
    %p53 = scmp.eq.s32.totalorder %s13, 0
    %p54 = por %p52, %p53
    %p55 = scmp.ne.s32.totalorder %s47, %s49
    %p56 = scmp.eq.s32.totalorder %s18, 1
    %p57 = por %p55, %p56
    %p58 = scmp.ne.s32.totalorder %s49, %s50
    %p59 = scmp.eq.s32.totalorder %s18, 0
    %p60 = por %p58, %p59
    %p61 = scmp.ne.s32.totalorder %s49, %s50
    %p62 = scmp.eq.s32.totalorder %s19, 1
    %p63 = por %p61, %p62
    %p65 = scmp.ne.s32.totalorder %s50, %s64
    %p66 = scmp.eq.s32.totalorder %s19, 0
    %p67 = por %p65, %p66
    %s69 = sadd.s32 %s68, 1
    %p72 = scmp.eq.s32.totalorder %s13, 1
    %p73 = scmp.ne.s32.totalorder %s68, %s70
    %p74 = scmp.eq.s32.totalorder %s13, 0
    %p75 = por %p73, %p74
    %p76 = scmp.ne.s32.totalorder %s68, %s70
    %p77 = scmp.eq.s32.totalorder %s18, 1
    %p78 = por %p76, %p77
    %p79 = scmp.ne.s32.totalorder %s70, %s71
    %p80 = scmp.eq.s32.totalorder %s18, 0
    %p81 = por %p79, %p80
    %p82 = scmp.ne.s32.totalorder %s70, %s71
    %p83 = scmp.eq.s32.totalorder %s19, 1
    %p84 = por %p82, %p83
    %p86 = scmp.ne.s32.totalorder %s71, %s85
    %p87 = scmp.eq.s32.totalorder %s19, 0
    %p88 = por %p86, %p87
    %s90 = sadd.s32 %s89, 1
    %p93 = scmp.eq.s32.totalorder %s13, 1
    %p94 = scmp.ne.s32.totalorder %s89, %s91
    %p95 = scmp.eq.s32.totalorder %s13, 0
    %p96 = por %p94, %p95
    %p97 = scmp.ne.s32.totalorder %s89, %s91
    %p98 = scmp.eq.s32.totalorder %s18, 1
    %p99 = por %p97, %p98
    %p100 = scmp.ne.s32.totalorder %s91, %s92
    %p101 = scmp.eq.s32.totalorder %s18, 0
    %p102 = por %p100, %p101
    %p103 = scmp.ne.s32.totalorder %s91, %s92
    %p104 = scmp.eq.s32.totalorder %s19, 1
    %p105 = por %p103, %p104
    %p107 = scmp.ne.s32.totalorder %s92, %s106
    %p108 = scmp.eq.s32.totalorder %s19, 0
    %p109 = por %p107, %p108
    %s110 = ssub.s32 %s13, %s20
    %p111 = scmp.eq.s32.totalorder %s110, 0
    %s113 = sadd.s32 %s112, 1
    %s114 = scalar_select %p111, %s112, %s113
    %p117 = pneg %p111
    %p118 = scmp.eq.s32.totalorder %s13, 1
    %p119 = por %p117, %p118
    %p120 = scmp.ne.s32.totalorder %s112, %s115
    %p121 = scmp.eq.s32.totalorder %s13, 0
    %p122 = por %p120, %p121
    %p123 = scmp.ne.s32.totalorder %s112, %s115
    %p124 = scmp.eq.s32.totalorder %s18, 1
    %p125 = por %p123, %p124
    %p126 = scmp.ne.s32.totalorder %s115, %s116
    %p127 = scmp.eq.s32.totalorder %s18, 0
    %p128 = por %p126, %p127
    %p129 = scmp.ne.s32.totalorder %s115, %s116
    %p130 = scmp.eq.s32.totalorder %s19, 1
    %p131 = por %p129, %p130
    %p133 = scmp.ne.s32.totalorder %s116, %s132
    %p134 = scmp.eq.s32.totalorder %s19, 0
    %p135 = por %p133, %p134
    %s136 = ssub.s32 %s13, %s20
    %p137 = scmp.eq.s32.totalorder %s136, 0
    %s139 = sadd.s32 %s138, 1
    %s140 = scalar_select %p137, %s138, %s139
    %p143 = pneg %p137
    %p144 = scmp.eq.s32.totalorder %s13, 1
    %p145 = por %p143, %p144
    %p146 = scmp.ne.s32.totalorder %s138, %s141
    %p147 = scmp.eq.s32.totalorder %s13, 0
    %p148 = por %p146, %p147
    %p149 = scmp.ne.s32.totalorder %s138, %s141
    %p150 = scmp.eq.s32.totalorder %s18, 1
    %p151 = por %p149, %p150
    %p152 = scmp.ne.s32.totalorder %s141, %s142
    %p153 = scmp.eq.s32.totalorder %s18, 0
    %p154 = por %p152, %p153
    %p155 = scmp.ne.s32.totalorder %s141, %s142
    %p156 = scmp.eq.s32.totalorder %s19, 1
    %p157 = por %p155, %p156
    %p159 = scmp.ne.s32.totalorder %s142, %s158
    %p160 = scmp.eq.s32.totalorder %s19, 0
    %p161 = por %p159, %p160
    %s162 = ssub.s32 %s13, %s20
    %p163 = scmp.eq.s32.totalorder %s162, 0
    %s165 = sadd.s32 %s164, 1
    %s166 = scalar_select %p163, %s164, %s165
    %p169 = pneg %p163
    %p170 = scmp.eq.s32.totalorder %s13, 1
    %p171 = por %p169, %p170
    %p172 = scmp.ne.s32.totalorder %s164, %s167
    %p173 = scmp.eq.s32.totalorder %s13, 0
    %p174 = por %p172, %p173
    %p175 = scmp.ne.s32.totalorder %s164, %s167
    %p176 = scmp.eq.s32.totalorder %s18, 1
    %p177 = por %p175, %p176
    %p178 = scmp.ne.s32.totalorder %s167, %s168
    %p179 = scmp.eq.s32.totalorder %s18, 0
    %p180 = por %p178, %p179
    %p181 = scmp.ne.s32.totalorder %s167, %s168
    %p182 = scmp.eq.s32.totalorder %s19, 1
    %p183 = por %p181, %p182
    %p185 = scmp.ne.s32.totalorder %s168, %s184
    %p186 = scmp.eq.s32.totalorder %s19, 0
    %p187 = por %p185, %p186
    %p188 = scmp.le.s32.totalorder 1, %s13
    %p189 = scmp.lt.s32.totalorder %s13, 3
    %p190 = pnand %p188, %p189
    %p191 = pneg %p190
    // Predicated region
    $region9: #{tpu_custom_call.1} parent=5 // pred_check
      _
    $region10: #{tpu_custom_call.1} parent=5 // pred_check_branch
      %193 = sbr.rel (%p190) target = $region12
    $region11: #{tpu_custom_call.1} parent=5 // pred_region
      %s194 = ssub.s32 %s13, 1
      // Predicated region
      $region13: #{tpu_custom_call.1} parent=11 // pred_check
        %p195 = pneg %p60
      $region14: #{tpu_custom_call.1} parent=11 // pred_check_branch
        %197 = sbr.rel (%p195) target = $region16
      $region15: #{tpu_custom_call.1} parent=11 // pred_region
        _
      $region16: #{tpu_custom_call.1} parent=11 // pred_fallthru
        _
      // Predicated region
      $region17: #{tpu_custom_call.1} parent=11 // pred_check
        %p198 = pneg %p81
      $region18: #{tpu_custom_call.1} parent=11 // pred_check_branch
        %200 = sbr.rel (%p198) target = $region20
      $region19: #{tpu_custom_call.1} parent=11 // pred_region
        _
      $region20: #{tpu_custom_call.1} parent=11 // pred_fallthru
        _
      // Predicated region
      $region21: #{tpu_custom_call.1} parent=11 // pred_check
        %p201 = pneg %p102
      $region22: #{tpu_custom_call.1} parent=11 // pred_check_branch
        %203 = sbr.rel (%p201) target = $region24
      $region23: #{tpu_custom_call.1} parent=11 // pred_region
        _
      $region24: #{tpu_custom_call.1} parent=11 // pred_fallthru
        _
    $region12: #{tpu_custom_call.1} parent=5 // pred_fallthru
      _
    %p204 = scmp.lt.s32.totalorder %s13, 2
    // Predicated region
    $region25: #{tpu_custom_call.1} parent=5 // pred_check
      %p205 = pneg %p204
    $region26: #{tpu_custom_call.1} parent=5 // pred_check_branch
      %207 = sbr.rel (%p205) target = $region28
    $region27: #{tpu_custom_call.1} parent=5 // pred_region
      // Predicated region
      $region29: #{tpu_custom_call.1} parent=27 // pred_check
        %p208 = pneg %p33
      $region30: #{tpu_custom_call.1} parent=27 // pred_check_branch
        %210 = sbr.rel (%p208) target = $region32
      $region31: #{tpu_custom_call.1} parent=27 // pred_region
        %s211 = smul.u32 8, %s13
        %p212 = scmp.lt.s32.totalorder %s211, 15
        %s213 = scalar_select %p212, %s211, 15
        %s214 = smul.addr %s213, 8
        %s215 = scalar_lea.vmem %s0, %s214
        %s216 = smul.u32 8, %s13
      $region32: #{tpu_custom_call.1} parent=27 // pred_fallthru
        _
    $region28: #{tpu_custom_call.1} parent=5 // pred_fallthru
      _
    %p217 = scmp.le.s32.totalorder 1, %s13
    %p218 = scmp.lt.s32.totalorder %s13, 3
    %p219 = pnand %p217, %p218
    %p220 = pneg %p219
    // Predicated region
    $region33: #{tpu_custom_call.1} parent=5 // pred_check
      _
    $region34: #{tpu_custom_call.1} parent=5 // pred_check_branch
      %222 = sbr.rel (%p219) target = $region36
    $region35: #{tpu_custom_call.1} parent=5 // pred_region
      %s223 = ssub.s32 %s13, 1
      %s224 = smul.u32 8, %s18
      %p225 = scmp.lt.s32.totalorder %s224, 15
      %s226 = scalar_select %p225, %s224, 15
      %s227 = smul.addr %s226, 8
      %s228 = scalar_lea.vmem %s0, %s227
      %p229 = pneg %p39
      %p230 = pneg %p36
      %p231 = pneg %p60
      %p232 = pneg %p57
      %p233 = pneg %p81
      %p234 = pneg %p78
      %p235 = pneg %p102
      %p236 = pneg %p99
      %p237 = pneg %p128
      %p238 = pneg %p125
      %s239 = smul.u32 4, %s18
      %p240 = scmp.lt.s32.totalorder %s239, 7
      %s241 = scalar_select %p240, %s239, 7
      %s242 = smul.addr %s241, 8
      %s243 = scalar_lea.vmem %s4, %s242
      %p244 = pneg %p154
      %p245 = pneg %p151
      %s246 = smul.u32 2, %s18
      %p247 = scmp.lt.s32.totalorder %s246, 3
      %s248 = scalar_select %p247, %s246, 3
      %s249 = smul.addr %s248, 8
      %s250 = scalar_lea.vmem %s5, %s249
      %p251 = pneg %p180
      %p252 = pneg %p177
      %p253 = scmp.lt.s32.totalorder %s18, 1
      %s254 = scalar_select %p253, %s18, 1
      %s255 = smul.addr %s254, 8
      %s256 = scalar_lea.vmem %s6, %s255
      %s257 = smul.u32 8, %s18
      %p258 = scmp.lt.s32.totalorder %s257, 15
      %s259 = scalar_select %p258, %s257, 15
      %s260 = smul.addr %s259, 8
      %s261 = scalar_lea.vmem %s0, %s260
      %s262 = smul.u32 8, %s18
      %s263 = smul.u32 4, %s18
      %p264 = scmp.lt.s32.totalorder %s263, 7
      %s265 = scalar_select %p264, %s263, 7
      %s266 = smul.addr %s265, 8
      %s267 = scalar_lea.vmem %s4, %s266
      %s268 = smul.u32 4, %s18
      %s269 = smul.u32 2, %s18
      %p270 = scmp.lt.s32.totalorder %s269, 3
      %s271 = scalar_select %p270, %s269, 3
      %s272 = smul.addr %s271, 8
      %s273 = scalar_lea.vmem %s5, %s272
      %s274 = smul.u32 2, %s18
      %p275 = scmp.lt.s32.totalorder %s18, 1
      %s276 = scalar_select %p275, %s18, 1
      %s277 = smul.addr %s276, 8
      %s278 = scalar_lea.vmem %s6, %s277
      %v279 = vld [vmem:[%s1] sm:$0xff]
      %v280 = vld [vmem:[%s1 + $0x8] sm:$0xff]
      %v281 = vld [vmem:[%s261] ss:$2 sm:$0xff]
      %s282 = scalar_lea.vmem %s261, 16
      %v283 = vld [vmem:[%s282] ss:$2 sm:$0xff]
      %s284 = scalar_lea.vmem %s261, 32
      %v285 = vld [vmem:[%s284] ss:$2 sm:$0xff]
      %s286 = scalar_lea.vmem %s261, 48
      %v287 = vld [vmem:[%s286] ss:$2 sm:$0xff]
      %s288 = scalar_lea.vmem %s261, 1
      %v289 = vld [vmem:[%s288] ss:$2 sm:$0xff]
      %s290 = scalar_lea.vmem %s261, 17
      %v291 = vld [vmem:[%s290] ss:$2 sm:$0xff]
      %s292 = scalar_lea.vmem %s261, 33
      %v293 = vld [vmem:[%s292] ss:$2 sm:$0xff]
      %s294 = scalar_lea.vmem %s261, 49
      %v295 = vld [vmem:[%s294] ss:$2 sm:$0xff]
      %v296 = vadd.f32 %v281, %v289
      %v297 = vadd.f32 %v283, %v291
      %v298 = vadd.f32 %v285, %v293
      %v299 = vadd.f32 %v287, %v295
      %vm300 = vcmask 130048
      %v302 = vsel %vm300, %v296, 0
      %v305 = vsel %vm300, %v297, 0
      %v308 = vsel %vm300, %v298, 0
      %v311 = vsel %vm300, %v299, 0
      %313 = vmatprep.subr.mxu0 0.0
      %314 = vmatpush1.msra.mxu0 0.0
      %315 = vmatprep.subr.mxu0 0.0
      %316 = vmatpush1.msra.mxu0 0.0
      %317 = vmatprep.subr.mxu0 0.0
      %318 = vmatpush1.msra.mxu0 0.0
      %319 = vmatprep.subr.mxu0 0.0
      %320 = vmatpush1.msra.mxu0 0.0
      %321 = vmatprep.subr.mxu0 0.0
      %322 = vmatpush1.msra.mxu0 0.0
      %323 = vmatprep.subr.mxu0 0.0
      %324 = vmatpush1.msra.mxu0 0.0
      %325 = vmatprep.subr.mxu0 0.0
      %326 = vmatpush1.msra.mxu0 0.0
      %327 = vmatprep.subr.mxu0 0.0
      %328 = vmatpush1.msra.mxu0 0.0
      %329 = vmatprep.subr.mxu0 0.0
      %330 = vmatpush1.msra.mxu0 0.0
      %331 = vmatprep.subr.mxu0 0.0
      %332 = vmatpush1.msra.mxu0 0.0
      %333 = vmatprep.subr.mxu0 0.0
      %334 = vmatpush1.msra.mxu0 0.0
      %335 = vmatprep.subr.mxu0 0.0
      %336 = vmatpush1.msra.mxu0 0.0
      %337 = vmatprep.subr.mxu0 0.0
      %338 = vmatpush1.msra.mxu0 0.0
      %339 = vmatprep.subr.mxu0 0.0
      %340 = vmatpush1.msra.mxu0 0.0
      %341 = vmatprep.subr.mxu0 0.0
      %342 = vmatpush1.msra.mxu0 %v280
      %343 = vmatprep.subr.mxu0 0.0
      %344 = vmatpush1.msra.mxu0 %v279
      %345 = vmatprep.subr.mxu0 0.0
      %346 = vmatpush2.msra.mxu0 0.0
      %347 = vmatprep.subr.mxu0 0.0
      %348 = vmatpush2.msra.mxu0 0.0
      %349 = vmatprep.subr.mxu0 0.0
      %350 = vmatpush2.msra.mxu0 0.0
      %351 = vmatprep.subr.mxu0 0.0
      %352 = vmatpush2.msra.mxu0 0.0
      %353 = vmatprep.subr.mxu0 0.0
      %354 = vmatpush2.msra.mxu0 0.0
      %355 = vmatprep.subr.mxu0 0.0
      %356 = vmatpush2.msra.mxu0 0.0
      %357 = vmatprep.subr.mxu0 0.0
      %358 = vmatpush2.msra.mxu0 0.0
      %359 = vmatprep.subr.mxu0 0.0
      %360 = vmatpush2.msra.mxu0 0.0
      %361 = vmatprep.subr.mxu0 0.0
      %362 = vmatpush2.msra.mxu0 0.0
      %363 = vmatprep.subr.mxu0 0.0
      %364 = vmatpush2.msra.mxu0 0.0
      %365 = vmatprep.subr.mxu0 0.0
      %366 = vmatpush2.msra.mxu0 0.0
      %367 = vmatprep.subr.mxu0 0.0
      %368 = vmatpush2.msra.mxu0 0.0
      %369 = vmatprep.subr.mxu0 0.0
      %370 = vmatpush2.msra.mxu0 0.0
      %371 = vmatprep.subr.mxu0 0.0
      %372 = vmatpush2.msra.mxu0 0.0
      %373 = vmatprep.subr.mxu0 0.0
      %374 = vmatpush2.msra.mxu0 0.0
      %375 = vmatprep.subr.mxu0 0.0
      %376 = vmatpush2.msra.mxu0 0.0
      %377 = vmatprep.mubr.f32.mxu0 0.0
      %378 = vmatmul.mubr.f32.gmra.mxu0 %v302
      %v379 = vpop.f32.mrf.mxu0
      %v380 = vadd.f32 0.0, %v379
      %v381 = vpop.f32.mrf.mxu0
      %382 = vmatprep.mubr.f32.mxu0 0.0
      %383 = vmatmul.mubr.f32.gmra.mxu0 %v305
      %v384 = vpop.f32.mrf.mxu0
      %v385 = vadd.f32 0.0, %v384
      %v386 = vpop.f32.mrf.mxu0
      %387 = vmatprep.mubr.f32.mxu0 0.0
      %388 = vmatmul.mubr.f32.gmra.mxu0 %v308
      %v389 = vpop.f32.mrf.mxu0
      %v390 = vadd.f32 0.0, %v389
      %v391 = vpop.f32.mrf.mxu0
      %392 = vmatprep.mubr.f32.mxu0 0.0
      %393 = vmatmul.mubr.f32.gmra.mxu0 %v311
      %v394 = vpop.f32.mrf.mxu0
      %v395 = vadd.f32 0.0, %v394
      %v396 = vpop.f32.mrf.mxu0
      %397 = vdwg.mxu0
      %vm398 = vcmask 64512
      %399 = vst.msk [vmem:[%s267] sm:$0xff] %vm398, %v380
      %400 = vst.msk [vmem:[%s267 + $0x8] sm:$0xff] %vm398, %v385
      %401 = vst.msk [vmem:[%s267 + $0x10] sm:$0xff] %vm398, %v390
      %402 = vst.msk [vmem:[%s267 + $0x18] sm:$0xff] %vm398, %v395
      %v403 = vld [vmem:[%s2] sm:$0xff]
      %v404 = vld [vmem:[%s267] ss:$2 sm:$0xff]
      %s405 = scalar_lea.vmem %s267, 16
      %v406 = vld [vmem:[%s405] ss:$2 sm:$0xff]
      %s407 = scalar_lea.vmem %s267, 1
      %v408 = vld [vmem:[%s407] ss:$2 sm:$0xff]
      %s409 = scalar_lea.vmem %s267, 17
      %v410 = vld [vmem:[%s409] ss:$2 sm:$0xff]
      %v411 = vadd.f32 %v404, %v408
      %v412 = vadd.f32 %v406, %v410
      %v414 = vsel %vm398, %v411, 0
      %v417 = vsel %vm398, %v412, 0
      %419 = vmatprep.subr.mxu0 0.0
      %420 = vmatpush1.msra.mxu0 0.0
      %421 = vmatprep.subr.mxu0 0.0
      %422 = vmatpush1.msra.mxu0 0.0
      %423 = vmatprep.subr.mxu0 0.0
      %424 = vmatpush1.msra.mxu0 0.0
      %425 = vmatprep.subr.mxu0 0.0
      %426 = vmatpush1.msra.mxu0 0.0
      %427 = vmatprep.subr.mxu0 0.0
      %428 = vmatpush1.msra.mxu0 0.0
      %429 = vmatprep.subr.mxu0 0.0
      %430 = vmatpush1.msra.mxu0 0.0
      %431 = vmatprep.subr.mxu0 0.0
      %432 = vmatpush1.msra.mxu0 0.0
      %433 = vmatprep.subr.mxu0 0.0
      %434 = vmatpush1.msra.mxu0 0.0
      %435 = vmatprep.subr.mxu0 0.0
      %436 = vmatpush1.msra.mxu0 0.0
      %437 = vmatprep.subr.mxu0 0.0
      %438 = vmatpush1.msra.mxu0 0.0
      %439 = vmatprep.subr.mxu0 0.0
      %440 = vmatpush1.msra.mxu0 0.0
      %441 = vmatprep.subr.mxu0 0.0
      %442 = vmatpush1.msra.mxu0 0.0
      %443 = vmatprep.subr.mxu0 0.0
      %444 = vmatpush1.msra.mxu0 0.0
      %445 = vmatprep.subr.mxu0 0.0
      %446 = vmatpush1.msra.mxu0 0.0
      %447 = vmatprep.subr.mxu0 0.0
      %448 = vmatpush1.msra.mxu0 0.0
      %449 = vmatprep.subr.mxu0 0.0
      %450 = vmatpush1.msra.mxu0 %v403
      %451 = vmatprep.subr.mxu0 0.0
      %452 = vmatpush2.msra.mxu0 0.0
      %453 = vmatprep.subr.mxu0 0.0
      %454 = vmatpush2.msra.mxu0 0.0
      %455 = vmatprep.subr.mxu0 0.0
      %456 = vmatpush2.msra.mxu0 0.0
      %457 = vmatprep.subr.mxu0 0.0
      %458 = vmatpush2.msra.mxu0 0.0
      %459 = vmatprep.subr.mxu0 0.0
      %460 = vmatpush2.msra.mxu0 0.0
      %461 = vmatprep.subr.mxu0 0.0
      %462 = vmatpush2.msra.mxu0 0.0
      %463 = vmatprep.subr.mxu0 0.0
      %464 = vmatpush2.msra.mxu0 0.0
      %465 = vmatprep.subr.mxu0 0.0
      %466 = vmatpush2.msra.mxu0 0.0
      %467 = vmatprep.subr.mxu0 0.0
      %468 = vmatpush2.msra.mxu0 0.0
      %469 = vmatprep.subr.mxu0 0.0
      %470 = vmatpush2.msra.mxu0 0.0
      %471 = vmatprep.subr.mxu0 0.0
      %472 = vmatpush2.msra.mxu0 0.0
      %473 = vmatprep.subr.mxu0 0.0
      %474 = vmatpush2.msra.mxu0 0.0
      %475 = vmatprep.subr.mxu0 0.0
      %476 = vmatpush2.msra.mxu0 0.0
      %477 = vmatprep.subr.mxu0 0.0
      %478 = vmatpush2.msra.mxu0 0.0
      %479 = vmatprep.subr.mxu0 0.0
      %480 = vmatpush2.msra.mxu0 0.0
      %481 = vmatprep.subr.mxu0 0.0
      %482 = vmatpush2.msra.mxu0 0.0
      %483 = vmatprep.mubr.f32.mxu0 0.0
      %484 = vmatmul.mubr.f32.gmra.mxu0 %v414
      %v485 = vpop.f32.mrf.mxu0
      %v486 = vadd.f32 0.0, %v485
      %v487 = vpop.f32.mrf.mxu0
      %488 = vmatprep.mubr.f32.mxu0 0.0
      %489 = vmatmul.mubr.f32.gmra.mxu0 %v417
      %v490 = vpop.f32.mrf.mxu0
      %v491 = vadd.f32 0.0, %v490
      %v492 = vpop.f32.mrf.mxu0
      %493 = vdwg.mxu0
      %vm494 = vcmask 31744
      %495 = vst.msk [vmem:[%s273] sm:$0xff] %vm494, %v486
      %496 = vst.msk [vmem:[%s273 + $0x8] sm:$0xff] %vm494, %v491
      %v497 = vld [vmem:[%s3] sm:$0xf]
      %v498 = vld [vmem:[%s273] ss:$2 sm:$0xff]
      %s499 = scalar_lea.vmem %s273, 1
      %v500 = vld [vmem:[%s499] ss:$2 sm:$0xff]
      %v501 = vadd.f32 %v498, %v500
      %v503 = vsel %vm494, %v501, 0
      %vm505 = vcmask 1043456
      %v507 = vsel %vm505, %v497, 0
      %509 = vmatprep.subr.mxu0 0.0
      %510 = vmatpush1.msra.mxu0 0.0
      %511 = vmatprep.subr.mxu0 0.0
      %512 = vmatpush1.msra.mxu0 0.0
      %513 = vmatprep.subr.mxu0 0.0
      %514 = vmatpush1.msra.mxu0 0.0
      %515 = vmatprep.subr.mxu0 0.0
      %516 = vmatpush1.msra.mxu0 0.0
      %517 = vmatprep.subr.mxu0 0.0
      %518 = vmatpush1.msra.mxu0 0.0
      %519 = vmatprep.subr.mxu0 0.0
      %520 = vmatpush1.msra.mxu0 0.0
      %521 = vmatprep.subr.mxu0 0.0
      %522 = vmatpush1.msra.mxu0 0.0
      %523 = vmatprep.subr.mxu0 0.0
      %524 = vmatpush1.msra.mxu0 0.0
      %525 = vmatprep.subr.mxu0 0.0
      %526 = vmatpush1.msra.mxu0 0.0
      %527 = vmatprep.subr.mxu0 0.0
      %528 = vmatpush1.msra.mxu0 0.0
      %529 = vmatprep.subr.mxu0 0.0
      %530 = vmatpush1.msra.mxu0 0.0
      %531 = vmatprep.subr.mxu0 0.0
      %532 = vmatpush1.msra.mxu0 0.0
      %533 = vmatprep.subr.mxu0 0.0
      %534 = vmatpush1.msra.mxu0 0.0
      %535 = vmatprep.subr.mxu0 0.0
      %536 = vmatpush1.msra.mxu0 0.0
      %537 = vmatprep.subr.mxu0 0.0
      %538 = vmatpush1.msra.mxu0 0.0
      %539 = vmatprep.subr.mxu0 0.0
      %540 = vmatpush1.msra.mxu0 %v507
      %541 = vmatprep.subr.mxu0 0.0
      %542 = vmatpush2.msra.mxu0 0.0
      %543 = vmatprep.subr.mxu0 0.0
      %544 = vmatpush2.msra.mxu0 0.0
      %545 = vmatprep.subr.mxu0 0.0
      %546 = vmatpush2.msra.mxu0 0.0
      %547 = vmatprep.subr.mxu0 0.0
      %548 = vmatpush2.msra.mxu0 0.0
      %549 = vmatprep.subr.mxu0 0.0
      %550 = vmatpush2.msra.mxu0 0.0
      %551 = vmatprep.subr.mxu0 0.0
      %552 = vmatpush2.msra.mxu0 0.0
      %553 = vmatprep.subr.mxu0 0.0
      %554 = vmatpush2.msra.mxu0 0.0
      %555 = vmatprep.subr.mxu0 0.0
      %556 = vmatpush2.msra.mxu0 0.0
      %557 = vmatprep.subr.mxu0 0.0
      %558 = vmatpush2.msra.mxu0 0.0
      %559 = vmatprep.subr.mxu0 0.0
      %560 = vmatpush2.msra.mxu0 0.0
      %561 = vmatprep.subr.mxu0 0.0
      %562 = vmatpush2.msra.mxu0 0.0
      %563 = vmatprep.subr.mxu0 0.0
      %564 = vmatpush2.msra.mxu0 0.0
      %565 = vmatprep.subr.mxu0 0.0
      %566 = vmatpush2.msra.mxu0 0.0
      %567 = vmatprep.subr.mxu0 0.0
      %568 = vmatpush2.msra.mxu0 0.0
      %569 = vmatprep.subr.mxu0 0.0
      %570 = vmatpush2.msra.mxu0 0.0
      %571 = vmatprep.subr.mxu0 0.0
      %572 = vmatpush2.msra.mxu0 0.0
      %573 = vmatprep.mubr.f32.mxu0 0.0
      %574 = vmatmul.mubr.f32.gmra.mxu0 %v503
      %v575 = vpop.f32.mrf.mxu0
      %v576 = vadd.f32 0.0, %v575
      %v577 = vpop.f32.mrf.mxu0
      %578 = vdwg.mxu0
      %vm579 = vcmask 15360
      %580 = vst.msk [vmem:[%s278] sm:$0xff] %vm579, %v576
      %s581 = smul.u32 4, %s18
      %p582 = scmp.lt.s32.totalorder %s581, 7
      %s583 = scalar_select %p582, %s581, 7
      %s584 = smul.addr %s583, 8
      %s585 = scalar_lea.vmem %s4, %s584
      %s586 = smul.u32 2, %s18
      %p587 = scmp.lt.s32.totalorder %s586, 3
      %s588 = scalar_select %p587, %s586, 3
      %s589 = smul.addr %s588, 8
      %s590 = scalar_lea.vmem %s5, %s589
      %p591 = scmp.lt.s32.totalorder %s18, 1
      %s592 = scalar_select %p591, %s18, 1
      %s593 = smul.addr %s592, 8
      %s594 = scalar_lea.vmem %s6, %s593
      // Predicated region
      $region37: #{tpu_custom_call.1} parent=35 // pred_check
        %p595 = pneg %p125
      $region38: #{tpu_custom_call.1} parent=35 // pred_check_branch
        %597 = sbr.rel (%p595) target = $region40
      $region39: #{tpu_custom_call.1} parent=35 // pred_region
        %s598 = smul.u32 4, %s18
      $region40: #{tpu_custom_call.1} parent=35 // pred_fallthru
        _
      // Predicated region
      $region41: #{tpu_custom_call.1} parent=35 // pred_check
        %p599 = pneg %p151
      $region42: #{tpu_custom_call.1} parent=35 // pred_check_branch
        %601 = sbr.rel (%p599) target = $region44
      $region43: #{tpu_custom_call.1} parent=35 // pred_region
        %s602 = smul.u32 2, %s18
      $region44: #{tpu_custom_call.1} parent=35 // pred_fallthru
        _
      // Predicated region
      $region45: #{tpu_custom_call.1} parent=35 // pred_check
        %p603 = pneg %p177
      $region46: #{tpu_custom_call.1} parent=35 // pred_check_branch
        %605 = sbr.rel (%p603) target = $region48
      $region47: #{tpu_custom_call.1} parent=35 // pred_region
        _
      $region48: #{tpu_custom_call.1} parent=35 // pred_fallthru
        _
    $region36: #{tpu_custom_call.1} parent=5 // pred_fallthru
      _
    %p606 = scmp.le.s32.totalorder 2, %s13
    // Predicated region
    $region49: #{tpu_custom_call.1} parent=5 // pred_check
      %p607 = pneg %p606
    $region50: #{tpu_custom_call.1} parent=5 // pred_check_branch
      %609 = sbr.rel (%p607) target = $region52
    $region51: #{tpu_custom_call.1} parent=5 // pred_region
      %s610 = ssub.s32 %s13, 2
      // Predicated region
      $region53: #{tpu_custom_call.1} parent=51 // pred_check
        %p611 = pneg %p131
      $region54: #{tpu_custom_call.1} parent=51 // pred_check_branch
        %613 = sbr.rel (%p611) target = $region56
      $region55: #{tpu_custom_call.1} parent=51 // pred_region
        %s614 = smul.u32 4, %s19
        %p615 = scmp.lt.s32.totalorder %s614, 7
        %s616 = scalar_select %p615, %s614, 7
        %s617 = smul.addr %s616, 8
        %s618 = scalar_lea.vmem %s4, %s617
      $region56: #{tpu_custom_call.1} parent=51 // pred_fallthru
        _
      // Predicated region
      $region57: #{tpu_custom_call.1} parent=51 // pred_check
        %p619 = pneg %p157
      $region58: #{tpu_custom_call.1} parent=51 // pred_check_branch
        %621 = sbr.rel (%p619) target = $region60
      $region59: #{tpu_custom_call.1} parent=51 // pred_region
        %s622 = smul.u32 2, %s19
        %p623 = scmp.lt.s32.totalorder %s622, 3
        %s624 = scalar_select %p623, %s622, 3
        %s625 = smul.addr %s624, 8
        %s626 = scalar_lea.vmem %s5, %s625
      $region60: #{tpu_custom_call.1} parent=51 // pred_fallthru
        _
      // Predicated region
      $region61: #{tpu_custom_call.1} parent=51 // pred_check
        %p627 = pneg %p183
      $region62: #{tpu_custom_call.1} parent=51 // pred_check_branch
        %629 = sbr.rel (%p627) target = $region64
      $region63: #{tpu_custom_call.1} parent=51 // pred_region
        %p630 = scmp.lt.s32.totalorder %s19, 1
        %s631 = scalar_select %p630, %s19, 1
        %s632 = smul.addr %s631, 8
        %s633 = scalar_lea.vmem %s6, %s632
      $region64: #{tpu_custom_call.1} parent=51 // pred_fallthru
        _
    $region52: #{tpu_custom_call.1} parent=5 // pred_fallthru
      _
  $region6: #{tpu_custom_call.1} parent=0 // loop_footer
    %s17 = sadd.s32 1, %s13
  $region7: #{tpu_custom_call.1} parent=0 // loop_footer_branch
    %12 = sbr.rel target = $region3
  $region8: #{tpu_custom_call.1} parent=0 // loop_exit
    _

</llo_original>
